<compile_context>
chip_gen: v5e
topology: v5e:2x2
jax: 0.10.0
libtpu: 0.0.40
codegen_flags: <defaults>
</compile_context>

<pallas_src>
import jax
import jax.numpy as jnp
from jax import lax
from jax.experimental import pallas as pl
from jax.experimental.pallas import tpu as pltpu


def _round_up(x, m):
    return ((x + m - 1) // m) * m


def _cdiv(a, b):
    return (a + b - 1) // b


def _vmem_limit_bytes():
    # Generation-aware scoped-VMEM budget: leave ~15% headroom for Mosaic
    # internal scratch; cap at 100 MiB (v5e/v6e have 128 MiB, v7x has 64 MiB).
    cap = 128 * 1024 * 1024
    try:
        info = pltpu.get_tpu_info()
        cap = int(getattr(info, "vmem_capacity_bytes", cap))
    except Exception:
        pass
    return min(int(cap * 0.85), 100 * 1024 * 1024)


def _vmem_footprint_bytes(tm, tf, E, out_bytes):
    # Double-buffered inputs/outputs + single f32 accumulator scratch.
    x_b = 2 * tm * E * 2          # bf16 x tile
    w1_b = 2 * tf * E * 2         # bf16 W1 tile (F, E layout)
    w2_b = 2 * tf * E * 2         # bf16 W2^T tile
    b1_b = 2 * tf * 4
    b2_b = 2 * E * 4
    out_b = 2 * tm * E * out_bytes
    acc_b = tm * E * 4
    return x_b + w1_b + w2_b + b1_b + b2_b + out_b + acc_b


def ffn_kernel(x_ref, w1_ref, b1_ref, w2_ref, b2_ref, o_ref, acc_ref):
    # Grid: (M_pad//tm [parallel rows], F_pad//tf [arbitrary: hidden-dim reduction]).
    #   x_ref:   (tm, E)  bf16 row tile
    #   w1_ref:  (tf, E)  bf16 W1 slice (PyTorch (F, E) layout — no transpose)
    #   b1_ref:  (1, tf)  f32
    #   w2_ref:  (tf, E)  bf16 W2^T slice
    #   b2_ref:  (1, E)   f32
    #   acc_ref: (tm, E)  f32 accumulator persisting across the F axis
    f_idx = pl.program_id(1)

    # h = x @ W1_slice.T  (contract E with E), bf16 x bf16 -> f32 on the MXU.
    h = lax.dot_general(
        x_ref[...], w1_ref[...],
        dimension_numbers=(((1,), (1,)), ((), ())),
        preferred_element_type=jnp.float32)
    h = jnp.maximum(h + b1_ref[...], 0.0)             # bias + ReLU in f32 (VPU)

    # This hidden slice's contribution to the (tm, E) output.
    contrib = jnp.dot(h.astype(w2_ref.dtype), w2_ref[...],
                      preferred_element_type=jnp.float32)

    @pl.when(f_idx == 0)
    def _first():
        acc_ref[...] = contrib                         # no separate zero-init pass

    @pl.when(f_idx > 0)
    def _accum():
        acc_ref[...] += contrib

    @pl.when(f_idx == pl.num_programs(1) - 1)
    def _finalize():
        o_ref[...] = (acc_ref[...] + b2_ref[...]).astype(o_ref.dtype)


def feed_forward(x, w1, b1, w2, b2, *, tm=512, tf=1024, out_dtype=None):
    """x: [B, S, E]; w1: [F, E]; b1: [F]; w2: [E, F]; b2: [E]  (PyTorch layout)."""
    B, S, E = x.shape
    F = w1.shape[0]
    M = B * S
    out_dtype = x.dtype if out_dtype is None else out_dtype
    out_bytes = jnp.dtype(out_dtype).itemsize

    # Clamp tiles to the problem. tm is rounded to a multiple of 16 (bf16 packs
    # 16 rows per sublane group); tf stays a multiple of 128.
    tm = min(tm, _round_up(M, 16))
    tf = min(tf, _round_up(F, 128))

    # Keep >=2 programs on the parallel row axis when there are enough rows, so
    # both v7x TensorCores get work.
    if M >= 256 and _cdiv(M, tm) < 2:
        tm = _round_up(_cdiv(M, 2), 16)

    # Shrink tiles if the estimated double-buffered footprint would blow the
    # generation-specific VMEM budget (matters on v7x's 64 MiB).
    vmem_limit = _vmem_limit_bytes()
    while _vmem_footprint_bytes(tm, tf, E, out_bytes) > vmem_limit and tf > 512:
        tf //= 2
    while _vmem_footprint_bytes(tm, tf, E, out_bytes) > vmem_limit and tm > 128:
        tm = max(128, tm // 2)

    M_pad = _round_up(M, tm)
    F_pad = _round_up(F, tf)

    # bf16 operands for the MXU (accumulation stays f32); biases stay f32.
    x2d = x.reshape(M, E).astype(jnp.bfloat16)
    if M_pad != M:
        x2d = jnp.pad(x2d, ((0, M_pad - M), (0, 0)))
    w1_fe = w1.astype(jnp.bfloat16)                    # (F, E) — PyTorch layout, no transpose
    w2_t = w2.T.astype(jnp.bfloat16)                   # (F, E)
    b1_2d = b1.reshape(1, F).astype(jnp.float32)
    if F_pad != F:
        # Zero-padded hidden units give ReLU(0)=0 and contribute nothing.
        w1_fe = jnp.pad(w1_fe, ((0, F_pad - F), (0, 0)))
        w2_t = jnp.pad(w2_t, ((0, F_pad - F), (0, 0)))
        b1_2d = jnp.pad(b1_2d, ((0, 0), (0, F_pad - F)))
    b2_2d = b2.reshape(1, E).astype(jnp.float32)

    grid = (M_pad // tm, F_pad // tf)

    flops = 4 * M_pad * F_pad * E                      # two matmuls
    # x read once per row tile; weights re-streamed once per row tile (grid[0]x).
    bytes_accessed = (x2d.size * 2
                      + grid[0] * (w1_fe.size + w2_t.size) * 2
                      + grid[0] * b1_2d.size * 4
                      + b2_2d.size * 4
                      + M_pad * E * out_bytes)

    out2d = pl.pallas_call(
        ffn_kernel,
        out_shape=jax.ShapeDtypeStruct((M_pad, E), out_dtype),
        grid_spec=pltpu.PrefetchScalarGridSpec(
            num_scalar_prefetch=0,
            grid=grid,
            in_specs=[
                pl.BlockSpec((tm, E), lambda i, f: (i, 0)),    # x row tile
                pl.BlockSpec((tf, E), lambda i, f: (f, 0)),    # W1 hidden slice (F, E)
                pl.BlockSpec((1, tf), lambda i, f: (0, f)),    # b1 hidden slice
                pl.BlockSpec((tf, E), lambda i, f: (f, 0)),    # W2^T hidden slice
                pl.BlockSpec((1, E), lambda i, f: (0, 0)),     # b2 (constant block)
            ],
            out_specs=pl.BlockSpec((tm, E), lambda i, f: (i, 0)),
            scratch_shapes=[pltpu.VMEM((tm, E), jnp.float32)],
        ),
        compiler_params=pltpu.CompilerParams(
            dimension_semantics=("parallel", "arbitrary"),
            vmem_limit_bytes=vmem_limit,
        ),
        cost_estimate=pl.CostEstimate(
            flops=int(flops), transcendentals=0, bytes_accessed=int(bytes_accessed)),
    )(x2d, w1_fe, b1_2d, w2_t, b2_2d)

    return out2d[:M].astype(x.dtype).reshape(B, S, E)


def init_params(key, embedding_dim, ff_dim, dtype=jnp.float32):
    # Deterministic init mimicking PyTorch nn.Linear default (uniform ±1/sqrt(fan_in)).
    k1, k2, k3, k4 = jax.random.split(key, 4)
    bound1 = 1.0 / (embedding_dim ** 0.5)
    bound2 = 1.0 / (ff_dim ** 0.5)
    w1 = jax.random.uniform(k1, (ff_dim, embedding_dim), dtype, -bound1, bound1)
    b1 = jax.random.uniform(k2, (ff_dim,), dtype, -bound1, bound1)
    w2 = jax.random.uniform(k3, (embedding_dim, ff_dim), dtype, -bound2, bound2)
    b2 = jax.random.uniform(k4, (embedding_dim,), dtype, -bound2, bound2)
    return w1, b1, w2, b2


if __name__ == "__main__":
    embedding_dim = 128
    ff_dim = 256
    B, S = 2, 16

    key = jax.random.PRNGKey(0)
    kx, kp = jax.random.split(key)
    x = jax.random.normal(kx, (B, S, embedding_dim), jnp.float32)
    w1, b1, w2, b2 = init_params(kp, embedding_dim, ff_dim)

    out = feed_forward(x, w1, b1, w2, b2)
    out = jax.block_until_ready(out)

    # Reference check in plain JAX (same semantics as the PyTorch module).
    # Tolerance loosened because the kernel uses bf16 MXU operands (f32 accumulation).
    ref = jnp.maximum(x @ w1.T + b1, 0.0) @ w2.T + b2
    assert out.shape == (B, S, embedding_dim)
    assert jnp.allclose(out, ref, atol=5e-2, rtol=5e-2), \
        f"max abs err {jnp.max(jnp.abs(out - ref))}"

    print("KERNEL_OK")
</pallas_src>

<mosaic_0001>
module attributes {stable_mosaic.version = 11 : i64} {
  func.func @ffn_kernel(%arg0: i32, %arg1: i32, %arg2: memref<32x128xbf16, #tpu.memory_space<vmem>>, %arg3: memref<256x128xbf16, #tpu.memory_space<vmem>>, %arg4: memref<1x256xf32, #tpu.memory_space<vmem>>, %arg5: memref<256x128xbf16, #tpu.memory_space<vmem>>, %arg6: memref<1x128xf32, #tpu.memory_space<vmem>>, %arg7: memref<32x128xf32, #tpu.memory_space<vmem>>, %arg8: memref<32x128xf32, #tpu.memory_space<vmem>>) attributes {dimension_semantics = [#tpu.dimension_semantics<parallel>, #tpu.dimension_semantics<arbitrary>], iteration_bounds = array<i64: 1, 1>, scalar_prefetch = 0 : i64, scratch_operands = 1 : i64, tpu.core_type = #tpu.core_type<tc>, window_params = [{transform_indices = @transform_0, window_bounds = array<i64: 32, 128>}, {transform_indices = @transform_1, window_bounds = array<i64: 256, 128>}, {transform_indices = @transform_2, window_bounds = array<i64: 1, 256>}, {transform_indices = @transform_3, window_bounds = array<i64: 256, 128>}, {pipeline_mode = #tpu.pipeline_mode<synchronous>, transform_indices = @transform_4, window_bounds = array<i64: 1, 128>}, {transform_indices = @transform_5, window_bounds = array<i64: 32, 128>}]} {
    %c0 = arith.constant 0 : index
    %c0_0 = arith.constant 0 : index
    %0 = vector.load %arg2[%c0, %c0_0] : memref<32x128xbf16, #tpu.memory_space<vmem>>, vector<32x128xbf16>
    %c0_1 = arith.constant 0 : index
    %c0_2 = arith.constant 0 : index
    %1 = vector.load %arg3[%c0_1, %c0_2] : memref<256x128xbf16, #tpu.memory_space<vmem>>, vector<256x128xbf16>
    %cst = arith.constant dense<0.000000e+00> : vector<32x256xf32>
    %2 = tpu.matmul %0, %1, %cst {dimension_numbers = #tpu.dot_dimension_numbers<[1], [1], [0], [0], [0, 0, 1, 0], [], []>} : vector<32x128xbf16>, vector<256x128xbf16>, vector<32x256xf32> -> vector<32x256xf32>
    %c0_3 = arith.constant 0 : index
    %c0_4 = arith.constant 0 : index
    %3 = vector.load %arg4[%c0_3, %c0_4] : memref<1x256xf32, #tpu.memory_space<vmem>>, vector<1x256xf32>
    %4 = vector.broadcast %3 : vector<1x256xf32> to vector<32x256xf32>
    %5 = arith.addf %2, %4 : vector<32x256xf32>
    %cst_5 = arith.constant 0.000000e+00 : f32
    %6 = vector.broadcast %cst_5 : f32 to vector<32x256xf32>
    %7 = arith.maximumf %5, %6 : vector<32x256xf32>
    %8 = arith.truncf %7 : vector<32x256xf32> to vector<32x256xbf16>
    %c0_6 = arith.constant 0 : index
    %c0_7 = arith.constant 0 : index
    %9 = vector.load %arg5[%c0_6, %c0_7] : memref<256x128xbf16, #tpu.memory_space<vmem>>, vector<256x128xbf16>
    %cst_8 = arith.constant dense<0.000000e+00> : vector<32x128xf32>
    %10 = tpu.matmul %8, %9, %cst_8 {dimension_numbers = #tpu.dot_dimension_numbers<[1], [0], [0], [1], [0, 0, 1, 1], [], []>} : vector<32x256xbf16>, vector<256x128xbf16>, vector<32x128xf32> -> vector<32x128xf32>
    %c0_i32 = arith.constant 0 : i32
    %11 = arith.cmpi eq, %arg1, %c0_i32 : i32
    %12 = arith.extui %11 : i1 to i32
    %c0_i32_9 = arith.constant 0 : i32
    %13 = arith.cmpi ne, %12, %c0_i32_9 : i32
    scf.if %13 {
      %c0_14 = arith.constant 0 : index
      %c0_15 = arith.constant 0 : index
      %20 = vector.load %arg8[%c0_14, %c0_15] : memref<32x128xf32, #tpu.memory_space<vmem>>, vector<32x128xf32>
      tpu.vector_store %arg8[%c0_14, %c0_15], %10 {strides = array<i32>} : memref<32x128xf32, #tpu.memory_space<vmem>>, vector<32x128xf32>,
    } else {
    }
    %c0_i32_10 = arith.constant 0 : i32
    %14 = arith.cmpi sgt, %arg1, %c0_i32_10 : i32
    %15 = arith.extui %14 : i1 to i32
    %c0_i32_11 = arith.constant 0 : i32
    %16 = arith.cmpi ne, %15, %c0_i32_11 : i32
    scf.if %16 {
      %c0_14 = arith.constant 0 : index
      %c0_15 = arith.constant 0 : index
      %20 = vector.load %arg8[%c0_14, %c0_15] : memref<32x128xf32, #tpu.memory_space<vmem>>, vector<32x128xf32>
      %21 = arith.addf %20, %10 : vector<32x128xf32>
      %c0_16 = arith.constant 0 : index
      %c0_17 = arith.constant 0 : index
      %22 = vector.load %arg8[%c0_16, %c0_17] : memref<32x128xf32, #tpu.memory_space<vmem>>, vector<32x128xf32>
      tpu.vector_store %arg8[%c0_16, %c0_17], %21 {strides = array<i32>} : memref<32x128xf32, #tpu.memory_space<vmem>>, vector<32x128xf32>,
    } else {
    }
    %c0_i32_12 = arith.constant 0 : i32
    %17 = arith.cmpi eq, %arg1, %c0_i32_12 : i32
    %18 = arith.extui %17 : i1 to i32
    %c0_i32_13 = arith.constant 0 : i32
    %19 = arith.cmpi ne, %18, %c0_i32_13 : i32
    scf.if %19 {
      %c0_14 = arith.constant 0 : index
      %c0_15 = arith.constant 0 : index
      %20 = vector.load %arg8[%c0_14, %c0_15] : memref<32x128xf32, #tpu.memory_space<vmem>>, vector<32x128xf32>
      %c0_16 = arith.constant 0 : index
      %c0_17 = arith.constant 0 : index
      %21 = vector.load %arg6[%c0_16, %c0_17] : memref<1x128xf32, #tpu.memory_space<vmem>>, vector<1x128xf32>
      %22 = vector.broadcast %21 : vector<1x128xf32> to vector<32x128xf32>
      %23 = arith.addf %20, %22 : vector<32x128xf32>
      %c0_18 = arith.constant 0 : index
      %c0_19 = arith.constant 0 : index
      %24 = vector.load %arg7[%c0_18, %c0_19] : memref<32x128xf32, #tpu.memory_space<vmem>>, vector<32x128xf32>
      tpu.vector_store %arg7[%c0_18, %c0_19], %23 {strides = array<i32>} : memref<32x128xf32, #tpu.memory_space<vmem>>, vector<32x128xf32>,
    } else {
    }
    return
  }
  func.func @transform_0(%arg0: i32, %arg1: i32) -> (i32, i32) {
    %c0_i32 = arith.constant 0 : i32
    %c0_i32_0 = arith.constant 0 : i32
    return %arg0, %c0_i32 : i32, i32
  }
  func.func @transform_1(%arg0: i32, %arg1: i32) -> (i32, i32) {
    %c0_i32 = arith.constant 0 : i32
    %c0_i32_0 = arith.constant 0 : i32
    return %arg1, %c0_i32 : i32, i32
  }
  func.func @transform_2(%arg0: i32, %arg1: i32) -> (i32, i32) {
    %c0_i32 = arith.constant 0 : i32
    %c0_i32_0 = arith.constant 0 : i32
    return %c0_i32, %arg1 : i32, i32
  }
  func.func @transform_3(%arg0: i32, %arg1: i32) -> (i32, i32) {
    %c0_i32 = arith.constant 0 : i32
    %c0_i32_0 = arith.constant 0 : i32
    return %arg1, %c0_i32 : i32, i32
  }
  func.func @transform_4(%arg0: i32, %arg1: i32) -> (i32, i32) {
    %c0_i32 = arith.constant 0 : i32
    %c0_i32_0 = arith.constant 0 : i32
    %c0_i32_1 = arith.constant 0 : i32
    return %c0_i32, %c0_i32_0 : i32, i32
  }
  func.func @transform_5(%arg0: i32, %arg1: i32) -> (i32, i32) {
    %c0_i32 = arith.constant 0 : i32
    %c0_i32_0 = arith.constant 0 : i32
    return %arg0, %c0_i32 : i32, i32
  }
}

</mosaic_0001>

<llo_original>
// kernel: tpu_custom_call.1
$region0: #{tpu_custom_call.1}
  #allocation0 [shape = 'u32[]', space=smem, size = 0x4, offset = 0x4, fixed_abs, tag = 'smem constant byte address 0x4 - core index']
  #allocation1 [shape = 'u32[72,128]{1,0:T(1,128)}', space=vmem, size = 0x9000, scoped, tag = 'internal scratch']
  #allocation2 [shape = 'f32[32,128]{1,0:T(8,128)}', space=vmem, size = 0x4000, scoped, tag = 'scratch operand']
  %s0 = inlined_call_operand.hbm [shape: bf16[32,128], index: 0, kind: input, shape index: {}]
  %s1 = inlined_call_operand.hbm [shape: bf16[256,128], index: 1, kind: input, shape index: {}]
  %s2 = inlined_call_operand.hbm [shape: f32[1,256], index: 2, kind: input, shape index: {}]
  %s3 = inlined_call_operand.hbm [shape: bf16[256,128], index: 3, kind: input, shape index: {}]
  %s4 = inlined_call_operand.vmem [shape: f32[1,128], index: 4, kind: input, shape index: {}]
  %s5 = inlined_call_operand.hbm [shape: f32[32,128], index: 5, kind: output, shape index: {}]
  %s6 = sld [smem:[#allocation0]]
  $region58: #{tpu_custom_call.1} parent=0
    _
  %s8 = ssub.s32 1, %s6
  %s9 = scalar_select 0, %s8, %s6
  $region1: #{tpu_custom_call.1} parent=0
    #allocation3 [shape = 'u8[8192]{0}', space=vmem, size = 0x2000, scoped, tag = 'input window, operand 0, single buffered']
    #allocation4 [shape = 's32[1]{0}', space=sflag, size = 0x4, scoped, tag = 'scoped memory for tpu_custom_call.1']
    #allocation5 [shape = 's32[1]{0}', space=sflag, size = 0x4, scoped, tag = 'scoped memory for tpu_custom_call.1']
    #allocation6 [shape = 'u8[65536]{0}', space=vmem, size = 0x10000, scoped, tag = 'input window, operand 1, single buffered']
    #allocation7 [shape = 's32[1]{0}', space=sflag, size = 0x4, scoped, tag = 'scoped memory for tpu_custom_call.1']
    #allocation8 [shape = 'u8[1024]{0}', space=vmem, size = 0x400, scoped, tag = 'input window, operand 2, single buffered']
    #allocation9 [shape = 'u8[65536]{0}', space=vmem, size = 0x10000, scoped, tag = 'input window, operand 3, single buffered']
    #allocation10 [shape = 's32[1]{0}', space=sflag, size = 0x4, scoped, tag = 'scoped memory for tpu_custom_call.1']
    #allocation11 [shape = 'u8[16384]{0}', space=vmem, size = 0x4000, scoped, tag = 'output window, operand 0, single buffered']
    %10 = vsyncpa [#allocation4], 0
    %11 = vsyncpa [#allocation7], 0
    %12 = vsyncpa [#allocation10], 0
    %13 = vsyncpa [#allocation5], 0
    // Predicated region
    $region2: #{tpu_custom_call.1} parent=1 // pred_check
      _
    $region3: #{tpu_custom_call.1} parent=1 // pred_check_branch
      %15 = sbr.rel (0) target = $region5
    $region4: #{tpu_custom_call.1} parent=1 // pred_region
      %17 = vsyncadd [#allocation4], 0
      %s18 = sshll.u32 %s0, 4
      %s19 = int_to_ptr.hbm [resolvable:$true] %s18
      %s20 = sshll.u32 [#allocation3], 4
      %s21 = int_to_ptr.vmem [resolvable:$true] %s20
      %26 = dma.hbm_to_vmem [thread:$0]  %s19, 256, %s21, [#allocation4], 64, 64, 4
    $region5: #{tpu_custom_call.1} parent=1 // pred_fallthru
      _
    // Predicated region
    $region6: #{tpu_custom_call.1} parent=1 // pred_check
      _
    $region7: #{tpu_custom_call.1} parent=1 // pred_check_branch
      %28 = sbr.rel (0) target = $region9
    $region8: #{tpu_custom_call.1} parent=1 // pred_region
      %30 = vsyncadd [#allocation7], 0
      %s31 = sshll.u32 %s1, 4
      %s32 = int_to_ptr.hbm [resolvable:$true] %s31
      %s33 = sshll.u32 [#allocation6], 4
      %s34 = int_to_ptr.vmem [resolvable:$true] %s33
      %39 = dma.hbm_to_vmem [thread:$0]  %s32, 2048, %s34, [#allocation7], 64, 64, 4
    $region9: #{tpu_custom_call.1} parent=1 // pred_fallthru
      _
    // Predicated region
    $region10: #{tpu_custom_call.1} parent=1 // pred_check
      _
    $region11: #{tpu_custom_call.1} parent=1 // pred_check_branch
      %41 = sbr.rel (0) target = $region13
    $region12: #{tpu_custom_call.1} parent=1 // pred_region
      %43 = vsyncadd [#allocation7], 0
      %s45 = sshll.u32 %s2, 4
      %s46 = int_to_ptr.hbm [resolvable:$true] %s45
      %s47 = sshll.u32 [#allocation8], 4
      %s48 = int_to_ptr.vmem [resolvable:$true] %s47
      %50 = dma.hbm_to_vmem [thread:$0]  %s46, 32, %s48, [#allocation7]
    $region13: #{tpu_custom_call.1} parent=1 // pred_fallthru
      _
    // Predicated region
    $region14: #{tpu_custom_call.1} parent=1 // pred_check
      _
    $region15: #{tpu_custom_call.1} parent=1 // pred_check_branch
      %52 = sbr.rel (0) target = $region17
    $region16: #{tpu_custom_call.1} parent=1 // pred_region
      %54 = vsyncadd [#allocation10], 0
      %s55 = sshll.u32 %s3, 4
      %s56 = int_to_ptr.hbm [resolvable:$true] %s55
      %s57 = sshll.u32 [#allocation9], 4
      %s58 = int_to_ptr.vmem [resolvable:$true] %s57
      %63 = dma.hbm_to_vmem [thread:$0]  %s56, 2048, %s58, [#allocation10], 64, 64, 4
    $region17: #{tpu_custom_call.1} parent=1 // pred_fallthru
      _
    // Predicated region
    $region18: #{tpu_custom_call.1} parent=1 // pred_check
      _
    $region19: #{tpu_custom_call.1} parent=1 // pred_check_branch
      %65 = sbr.rel (0) target = $region21
    $region20: #{tpu_custom_call.1} parent=1 // pred_region
      _
    $region21: #{tpu_custom_call.1} parent=1 // pred_fallthru
      _
    // Predicated region
    $region22: #{tpu_custom_call.1} parent=1 // pred_check
      _
    $region23: #{tpu_custom_call.1} parent=1 // pred_check_branch
      %67 = sbr.rel (0) target = $region25
    $region24: #{tpu_custom_call.1} parent=1 // pred_region
      %69 = dma.done [#allocation4], 256
    $region25: #{tpu_custom_call.1} parent=1 // pred_fallthru
      _
    // Predicated region
    $region26: #{tpu_custom_call.1} parent=1 // pred_check
      _
    $region27: #{tpu_custom_call.1} parent=1 // pred_check_branch
      %71 = sbr.rel (0) target = $region29
    $region28: #{tpu_custom_call.1} parent=1 // pred_region
      %73 = dma.done [#allocation7], 2048
    $region29: #{tpu_custom_call.1} parent=1 // pred_fallthru
      _
    // Predicated region
    $region30: #{tpu_custom_call.1} parent=1 // pred_check
      _
    $region31: #{tpu_custom_call.1} parent=1 // pred_check_branch
      %75 = sbr.rel (0) target = $region33
    $region32: #{tpu_custom_call.1} parent=1 // pred_region
      %77 = dma.done [#allocation7], 32
    $region33: #{tpu_custom_call.1} parent=1 // pred_fallthru
      _
    // Predicated region
    $region34: #{tpu_custom_call.1} parent=1 // pred_check
      _
    $region35: #{tpu_custom_call.1} parent=1 // pred_check_branch
      %79 = sbr.rel (0) target = $region37
    $region36: #{tpu_custom_call.1} parent=1 // pred_region
      %81 = dma.done [#allocation10], 2048
    $region37: #{tpu_custom_call.1} parent=1 // pred_fallthru
      _
    %v82 = vld [vmem:[#allocation3] sm:$0xf]
    %v83 = vld [vmem:[#allocation3 + $0x4] sm:$0xf]
    %v84 = vld [vmem:[#allocation3 + $0x8] sm:$0xf]
    %v85 = vld [vmem:[#allocation3 + $0xc] sm:$0xf]
    %v86 = vld [vmem:[#allocation6] sm:$0xf]
    %v87 = vld [vmem:[#allocation6 + $0x4] sm:$0xf]
    %v88 = vld [vmem:[#allocation6 + $0x8] sm:$0xf]
    %v89 = vld [vmem:[#allocation6 + $0xc] sm:$0xf]
    %v90 = vld [vmem:[#allocation6 + $0x10] sm:$0xf]
    %v91 = vld [vmem:[#allocation6 + $0x14] sm:$0xf]
    %v92 = vld [vmem:[#allocation6 + $0x18] sm:$0xf]
    %v93 = vld [vmem:[#allocation6 + $0x1c] sm:$0xf]
    %v94 = vld [vmem:[#allocation6 + $0x20] sm:$0xf]
    %v95 = vld [vmem:[#allocation6 + $0x24] sm:$0xf]
    %v96 = vld [vmem:[#allocation6 + $0x28] sm:$0xf]
    %v97 = vld [vmem:[#allocation6 + $0x2c] sm:$0xf]
    %v98 = vld [vmem:[#allocation6 + $0x30] sm:$0xf]
    %v99 = vld [vmem:[#allocation6 + $0x34] sm:$0xf]
    %v100 = vld [vmem:[#allocation6 + $0x38] sm:$0xf]
    %v101 = vld [vmem:[#allocation6 + $0x3c] sm:$0xf]
    %v102 = vld [vmem:[#allocation6 + $0x40] sm:$0xf]
    %v103 = vld [vmem:[#allocation6 + $0x44] sm:$0xf]
    %v104 = vld [vmem:[#allocation6 + $0x48] sm:$0xf]
    %v105 = vld [vmem:[#allocation6 + $0x4c] sm:$0xf]
    %v106 = vld [vmem:[#allocation6 + $0x50] sm:$0xf]
    %v107 = vld [vmem:[#allocation6 + $0x54] sm:$0xf]
    %v108 = vld [vmem:[#allocation6 + $0x58] sm:$0xf]
    %v109 = vld [vmem:[#allocation6 + $0x5c] sm:$0xf]
    %v110 = vld [vmem:[#allocation6 + $0x60] sm:$0xf]
    %v111 = vld [vmem:[#allocation6 + $0x64] sm:$0xf]
    %v112 = vld [vmem:[#allocation6 + $0x68] sm:$0xf]
    %v113 = vld [vmem:[#allocation6 + $0x6c] sm:$0xf]
    %v114 = vld [vmem:[#allocation6 + $0x70] sm:$0xf]
    %v115 = vld [vmem:[#allocation6 + $0x74] sm:$0xf]
    %v116 = vld [vmem:[#allocation6 + $0x78] sm:$0xf]
    %v117 = vld [vmem:[#allocation6 + $0x7c] sm:$0xf]
    %v118 = vld [vmem:[#allocation8] sm:$0x3]
    %v120 = vperm.slane %v118, 0
    %v121 = vperm.slane %v118, 1
    %v128 = vunpack.c.l.b16 %v82
    %v129 = vunpack.c.l.b16 %v83
    %v130 = vunpack.c.l.b16 %v84
    %v131 = vunpack.c.l.b16 %v85
    %v132 = vpack.c.b16 %v129, %v128
    %v133 = vpack.c.b16 %v131, %v130
    %v168 = vunpack.c.l.b16 %v86
    %v169 = vunpack.c.l.b16 %v87
    %v170 = vunpack.c.l.b16 %v88
    %v171 = vunpack.c.l.b16 %v89
    %v172 = vunpack.c.l.b16 %v90
    %v173 = vunpack.c.l.b16 %v91
    %v174 = vunpack.c.l.b16 %v92
    %v175 = vunpack.c.l.b16 %v93
    %v176 = vunpack.c.l.b16 %v94
    %v177 = vunpack.c.l.b16 %v95
    %v178 = vunpack.c.l.b16 %v96
    %v179 = vunpack.c.l.b16 %v97
    %v180 = vunpack.c.l.b16 %v98
    %v181 = vunpack.c.l.b16 %v99
    %v182 = vunpack.c.l.b16 %v100
    %v183 = vunpack.c.l.b16 %v101
    %v184 = vunpack.c.l.b16 %v102
    %v185 = vunpack.c.l.b16 %v103
    %v186 = vunpack.c.l.b16 %v104
    %v187 = vunpack.c.l.b16 %v105
    %v188 = vunpack.c.l.b16 %v106
    %v189 = vunpack.c.l.b16 %v107
    %v190 = vunpack.c.l.b16 %v108
    %v191 = vunpack.c.l.b16 %v109
    %v192 = vunpack.c.l.b16 %v110
    %v193 = vunpack.c.l.b16 %v111
    %v194 = vunpack.c.l.b16 %v112
    %v195 = vunpack.c.l.b16 %v113
    %v196 = vunpack.c.l.b16 %v114
    %v197 = vunpack.c.l.b16 %v115
    %v198 = vunpack.c.l.b16 %v116
    %v199 = vunpack.c.l.b16 %v117
    %v200 = vpack.c.b16 %v169, %v168
    %v201 = vpack.c.b16 %v171, %v170
    %v202 = vpack.c.b16 %v173, %v172
    %v203 = vpack.c.b16 %v175, %v174
    %v204 = vpack.c.b16 %v177, %v176
    %v205 = vpack.c.b16 %v179, %v178
    %v206 = vpack.c.b16 %v181, %v180
    %v207 = vpack.c.b16 %v183, %v182
    %v208 = vpack.c.b16 %v185, %v184
    %v209 = vpack.c.b16 %v187, %v186
    %v210 = vpack.c.b16 %v189, %v188
    %v211 = vpack.c.b16 %v191, %v190
    %v212 = vpack.c.b16 %v193, %v192
    %v213 = vpack.c.b16 %v195, %v194
    %v214 = vpack.c.b16 %v197, %v196
    %v215 = vpack.c.b16 %v199, %v198
    %232 = vmatpush.bf16.xpose.msra.mxu0 %v207
    %233 = vmatpush.bf16.xpose.msra.mxu0 %v206
    %234 = vmatpush.bf16.xpose.msra.mxu0 %v205
    %235 = vmatpush.bf16.xpose.msra.mxu0 %v204
    %236 = vmatpush.bf16.xpose.msra.mxu0 %v203
    %237 = vmatpush.bf16.xpose.msra.mxu0 %v202
    %238 = vmatpush.bf16.xpose.msra.mxu0 %v201
    %239 = vmatpush.bf16.xpose.msra.mxu0 %v200
    %240 = vmatmul.bf16.gmra.mxu0 %v132
    %v241 = vpop.f32.mrf.mxu0
    %v242 = vadd.f32 %v120, %v241
    %v243 = vpop.f32.mrf.mxu0
    %v244 = vadd.f32 %v120, %v243
    %245 = vmatmul.bf16.gmra.mxu0 %v133
    %v246 = vpop.f32.mrf.mxu0
    %v247 = vadd.f32 %v120, %v246
    %v248 = vpop.f32.mrf.mxu0
    %v249 = vadd.f32 %v120, %v248
    %250 = vdwg.mxu0
    %251 = vmatpush.bf16.xpose.msra.mxu0 %v215
    %252 = vmatpush.bf16.xpose.msra.mxu0 %v214
    %253 = vmatpush.bf16.xpose.msra.mxu0 %v213
    %254 = vmatpush.bf16.xpose.msra.mxu0 %v212
    %255 = vmatpush.bf16.xpose.msra.mxu0 %v211
    %256 = vmatpush.bf16.xpose.msra.mxu0 %v210
    %257 = vmatpush.bf16.xpose.msra.mxu0 %v209
    %258 = vmatpush.bf16.xpose.msra.mxu0 %v208
    %259 = vmatmul.bf16.gmra.mxu0 %v132
    %v260 = vpop.f32.mrf.mxu0
    %v261 = vadd.f32 %v121, %v260
    %v262 = vpop.f32.mrf.mxu0
    %v263 = vadd.f32 %v121, %v262
    %264 = vmatmul.bf16.gmra.mxu0 %v133
    %v265 = vpop.f32.mrf.mxu0
    %v266 = vadd.f32 %v121, %v265
    %v267 = vpop.f32.mrf.mxu0
    %v268 = vadd.f32 %v121, %v267
    %269 = vdwg.mxu0
    %v270 = vmax.f32 %v242, 0.0
    %v271 = vmax.f32 %v261, 0.0
    %v272 = vmax.f32 %v244, 0.0
    %v273 = vmax.f32 %v263, 0.0
    %v274 = vmax.f32 %v247, 0.0
    %v275 = vmax.f32 %v266, 0.0
    %v276 = vmax.f32 %v249, 0.0
    %v277 = vmax.f32 %v268, 0.0
    %v278 = vpack.c.bf16 %v272, %v270
    %v279 = vpack.c.bf16 %v273, %v271
    %v280 = vpack.c.bf16 %v276, %v274
    %v281 = vpack.c.bf16 %v277, %v275
    %v282 = vld [vmem:[#allocation9] sm:$0xf]
    %v283 = vld [vmem:[#allocation9 + $0x4] sm:$0xf]
    %v284 = vld [vmem:[#allocation9 + $0x8] sm:$0xf]
    %v285 = vld [vmem:[#allocation9 + $0xc] sm:$0xf]
    %v286 = vld [vmem:[#allocation9 + $0x10] sm:$0xf]
    %v287 = vld [vmem:[#allocation9 + $0x14] sm:$0xf]
    %v288 = vld [vmem:[#allocation9 + $0x18] sm:$0xf]
    %v289 = vld [vmem:[#allocation9 + $0x1c] sm:$0xf]
    %v290 = vld [vmem:[#allocation9 + $0x20] sm:$0xf]
    %v291 = vld [vmem:[#allocation9 + $0x24] sm:$0xf]
    %v292 = vld [vmem:[#allocation9 + $0x28] sm:$0xf]
    %v293 = vld [vmem:[#allocation9 + $0x2c] sm:$0xf]
    %v294 = vld [vmem:[#allocation9 + $0x30] sm:$0xf]
    %v295 = vld [vmem:[#allocation9 + $0x34] sm:$0xf]
    %v296 = vld [vmem:[#allocation9 + $0x38] sm:$0xf]
    %v297 = vld [vmem:[#allocation9 + $0x3c] sm:$0xf]
    %v298 = vld [vmem:[#allocation9 + $0x40] sm:$0xf]
    %v299 = vld [vmem:[#allocation9 + $0x44] sm:$0xf]
    %v300 = vld [vmem:[#allocation9 + $0x48] sm:$0xf]
    %v301 = vld [vmem:[#allocation9 + $0x4c] sm:$0xf]
    %v302 = vld [vmem:[#allocation9 + $0x50] sm:$0xf]
    %v303 = vld [vmem:[#allocation9 + $0x54] sm:$0xf]
    %v304 = vld [vmem:[#allocation9 + $0x58] sm:$0xf]
    %v305 = vld [vmem:[#allocation9 + $0x5c] sm:$0xf]
    %v306 = vld [vmem:[#allocation9 + $0x60] sm:$0xf]
    %v307 = vld [vmem:[#allocation9 + $0x64] sm:$0xf]
    %v308 = vld [vmem:[#allocation9 + $0x68] sm:$0xf]
    %v309 = vld [vmem:[#allocation9 + $0x6c] sm:$0xf]
    %v310 = vld [vmem:[#allocation9 + $0x70] sm:$0xf]
    %v311 = vld [vmem:[#allocation9 + $0x74] sm:$0xf]
    %v312 = vld [vmem:[#allocation9 + $0x78] sm:$0xf]
    %v313 = vld [vmem:[#allocation9 + $0x7c] sm:$0xf]
    %v346 = vunpack.c.l.b16 %v282
    %v347 = vunpack.c.l.b16 %v283
    %v348 = vunpack.c.l.b16 %v284
    %v349 = vunpack.c.l.b16 %v285
    %v350 = vunpack.c.l.b16 %v286
    %v351 = vunpack.c.l.b16 %v287
    %v352 = vunpack.c.l.b16 %v288
    %v353 = vunpack.c.l.b16 %v289
    %v354 = vunpack.c.l.b16 %v290
    %v355 = vunpack.c.l.b16 %v291
    %v356 = vunpack.c.l.b16 %v292
    %v357 = vunpack.c.l.b16 %v293
    %v358 = vunpack.c.l.b16 %v294
    %v359 = vunpack.c.l.b16 %v295
    %v360 = vunpack.c.l.b16 %v296
    %v361 = vunpack.c.l.b16 %v297
    %v362 = vunpack.c.l.b16 %v298
    %v363 = vunpack.c.l.b16 %v299
    %v364 = vunpack.c.l.b16 %v300
    %v365 = vunpack.c.l.b16 %v301
    %v366 = vunpack.c.l.b16 %v302
    %v367 = vunpack.c.l.b16 %v303
    %v368 = vunpack.c.l.b16 %v304
    %v369 = vunpack.c.l.b16 %v305
    %v370 = vunpack.c.l.b16 %v306
    %v371 = vunpack.c.l.b16 %v307
    %v372 = vunpack.c.l.b16 %v308
    %v373 = vunpack.c.l.b16 %v309
    %v374 = vunpack.c.l.b16 %v310
    %v375 = vunpack.c.l.b16 %v311
    %v376 = vunpack.c.l.b16 %v312
    %v377 = vunpack.c.l.b16 %v313
    %v378 = vpack.c.b16 %v347, %v346
    %v379 = vpack.c.b16 %v349, %v348
    %v380 = vpack.c.b16 %v351, %v350
    %v381 = vpack.c.b16 %v353, %v352
    %v382 = vpack.c.b16 %v355, %v354
    %v383 = vpack.c.b16 %v357, %v356
    %v384 = vpack.c.b16 %v359, %v358
    %v385 = vpack.c.b16 %v361, %v360
    %v386 = vpack.c.b16 %v363, %v362
    %v387 = vpack.c.b16 %v365, %v364
    %v388 = vpack.c.b16 %v367, %v366
    %v389 = vpack.c.b16 %v369, %v368
    %v390 = vpack.c.b16 %v371, %v370
    %v391 = vpack.c.b16 %v373, %v372
    %v392 = vpack.c.b16 %v375, %v374
    %v393 = vpack.c.b16 %v377, %v376
    %410 = vmatpush.bf16.msra.mxu0 %v385
    %411 = vmatpush.bf16.msra.mxu0 %v384
    %412 = vmatpush.bf16.msra.mxu0 %v383
    %413 = vmatpush.bf16.msra.mxu0 %v382
    %414 = vmatpush.bf16.msra.mxu0 %v381
    %415 = vmatpush.bf16.msra.mxu0 %v380
    %416 = vmatpush.bf16.msra.mxu0 %v379
    %417 = vmatpush.bf16.msra.mxu0 %v378
    %418 = vmatmul.bf16.gmra.mxu0 %v278
    %v419 = vpop.f32.mrf.mxu0
    %v420 = vadd.f32 0.0, %v419
    %v421 = vpop.f32.mrf.mxu0
    %v422 = vadd.f32 0.0, %v421
    %423 = vmatmul.bf16.gmra.mxu0 %v280
    %v424 = vpop.f32.mrf.mxu0
    %v425 = vadd.f32 0.0, %v424
    %v426 = vpop.f32.mrf.mxu0
    %v427 = vadd.f32 0.0, %v426
    %428 = vdwg.mxu0
    %429 = vmatpush.bf16.msra.mxu0 %v393
    %430 = vmatpush.bf16.msra.mxu0 %v392
    %431 = vmatpush.bf16.msra.mxu0 %v391
    %432 = vmatpush.bf16.msra.mxu0 %v390
    %433 = vmatpush.bf16.msra.mxu0 %v389
    %434 = vmatpush.bf16.msra.mxu0 %v388
    %435 = vmatpush.bf16.msra.mxu0 %v387
    %436 = vmatpush.bf16.msra.mxu0 %v386
    %437 = vmatmul.bf16.gmra.mxu0 %v279
    %v438 = vpop.f32.mrf.mxu0
    %v439 = vadd.f32 %v420, %v438
    %v440 = vpop.f32.mrf.mxu0
    %v441 = vadd.f32 %v422, %v440
    %442 = vmatmul.bf16.gmra.mxu0 %v281
    %v443 = vpop.f32.mrf.mxu0
    %v444 = vadd.f32 %v425, %v443
    %v445 = vpop.f32.mrf.mxu0
    %v446 = vadd.f32 %v427, %v445
    %447 = vdwg.mxu0
    %p448 = scmp.eq.s32.totalorder 0, 0
    // Predicated region
    $region38: #{tpu_custom_call.1} parent=1 // pred_check
      %p449 = pneg %p448
    $region39: #{tpu_custom_call.1} parent=1 // pred_check_branch
      %451 = sbr.rel (%p449) target = $region41
    $region40: #{tpu_custom_call.1} parent=1 // pred_region
      %452 = vst [vmem:[#allocation2] sm:$0xff] %v439
      %453 = vst [vmem:[#allocation2 + $0x8] sm:$0xff] %v441
      %454 = vst [vmem:[#allocation2 + $0x10] sm:$0xff] %v444
      %455 = vst [vmem:[#allocation2 + $0x18] sm:$0xff] %v446
    $region41: #{tpu_custom_call.1} parent=1 // pred_fallthru
      _
    %p456 = scmp.gt.s32.totalorder 0, 0
    // Predicated region
    $region42: #{tpu_custom_call.1} parent=1 // pred_check
      %p457 = pneg %p456
    $region43: #{tpu_custom_call.1} parent=1 // pred_check_branch
      %459 = sbr.rel (%p457) target = $region45
    $region44: #{tpu_custom_call.1} parent=1 // pred_region
      %v460 = vld [vmem:[#allocation2] sm:$0xff]
      %v461 = vld [vmem:[#allocation2 + $0x8] sm:$0xff]
      %v462 = vld [vmem:[#allocation2 + $0x10] sm:$0xff]
      %v463 = vld [vmem:[#allocation2 + $0x18] sm:$0xff]
      %v464 = vadd.f32 %v460, %v439
      %v465 = vadd.f32 %v461, %v441
      %v466 = vadd.f32 %v462, %v444
      %v467 = vadd.f32 %v463, %v446
      %468 = vst [vmem:[#allocation2] sm:$0xff] %v464
      %469 = vst [vmem:[#allocation2 + $0x8] sm:$0xff] %v465
      %470 = vst [vmem:[#allocation2 + $0x10] sm:$0xff] %v466
      %471 = vst [vmem:[#allocation2 + $0x18] sm:$0xff] %v467
    $region45: #{tpu_custom_call.1} parent=1 // pred_fallthru
      _
    // Predicated region
    $region46: #{tpu_custom_call.1} parent=1 // pred_check
      %p472 = pneg %p448
    $region47: #{tpu_custom_call.1} parent=1 // pred_check_branch
      %474 = sbr.rel (%p472) target = $region49
    $region48: #{tpu_custom_call.1} parent=1 // pred_region
      %v475 = vld [vmem:[#allocation2] sm:$0xff]
      %v476 = vld [vmem:[#allocation2 + $0x8] sm:$0xff]
      %v477 = vld [vmem:[#allocation2 + $0x10] sm:$0xff]
      %v478 = vld [vmem:[#allocation2 + $0x18] sm:$0xff]
      %v479 = vld [vmem:[%s4] sm:$0x1]
      %v481 = vperm.slane %v479, 0
      %v483 = vadd.f32 %v475, %v481
      %v484 = vadd.f32 %v476, %v481
      %v485 = vadd.f32 %v477, %v481
      %v486 = vadd.f32 %v478, %v481
      %487 = vst [vmem:[#allocation11] sm:$0xff] %v483
      %488 = vst [vmem:[#allocation11 + $0x8] sm:$0xff] %v484
      %489 = vst [vmem:[#allocation11 + $0x10] sm:$0xff] %v485
      %490 = vst [vmem:[#allocation11 + $0x18] sm:$0xff] %v486
    $region49: #{tpu_custom_call.1} parent=1 // pred_fallthru
      _
    // Predicated region
    $region50: #{tpu_custom_call.1} parent=1 // pred_check
      _
    $region51: #{tpu_custom_call.1} parent=1 // pred_check_branch
      %492 = sbr.rel (0) target = $region53
    $region52: #{tpu_custom_call.1} parent=1 // pred_region
      %494 = vsyncadd [#allocation5], 0
      %s495 = sshll.u32 [#allocation11], 4
      %s496 = int_to_ptr.vmem [resolvable:$true] %s495
      %s497 = sshll.u32 %s5, 4
      %s498 = int_to_ptr.hbm [resolvable:$true] %s497
      %503 = dma.vmem_to_hbm [thread:$0]  %s496, 512, %s498, [#allocation5], 128, 128, 8
    $region53: #{tpu_custom_call.1} parent=1 // pred_fallthru
      _
    // Predicated region
    $region54: #{tpu_custom_call.1} parent=1 // pred_check
      _
    $region55: #{tpu_custom_call.1} parent=1 // pred_check_branch
      %505 = sbr.rel (0) target = $region57
    $region56: #{tpu_custom_call.1} parent=1 // pred_region
      %507 = dma.done [#allocation5], 512
    $region57: #{tpu_custom_call.1} parent=1 // pred_fallthru
      _
    %508 = vsyncpa [#allocation4], 1
    %509 = vsyncpa [#allocation7], 1
    %510 = vsyncpa [#allocation10], 1
    %511 = vsyncpa [#allocation5], 1

</llo_original>
